<compile_context>
chip_gen: v5e
topology: v5e:2x2
jax: 0.10.0
libtpu: 0.0.40
codegen_flags: <defaults>
</compile_context>

<pallas_src>
import functools

import jax
import jax.numpy as jnp
from jax.experimental import pallas as pl
from jax.experimental.pallas import tpu as pltpu


# --------------------------------------------------------------------------
# Kernel 1: fused forward + geodesic_difference.
#   Inputs are in [D, B] (lane-dense) layout; dt is an SMEM scalar.
#   pos' = pos + dt * vel ; vel' = vel ; diff = x_new - x0
# --------------------------------------------------------------------------
def _fused_forward_diff_kernel(dt_ref, x_ref, x0_ref, xnew_ref, diff_ref):
    d = x_ref.shape[0]
    h = d // 2
    dt = dt_ref[0].astype(x_ref.dtype)
    x = x_ref[...]
    vel = x[h:, :]
    x_new = jnp.concatenate([x[:h, :] + dt * vel, vel], axis=0)
    xnew_ref[...] = x_new
    diff_ref[...] = x_new - x0_ref[...]


# --------------------------------------------------------------------------
# Kernel 2: forward only ([D, B] layout, SMEM dt).
# --------------------------------------------------------------------------
def _forward_kernel(dt_ref, x_ref, o_ref):
    d = x_ref.shape[0]
    h = d // 2
    dt = dt_ref[0].astype(x_ref.dtype)
    x = x_ref[...]
    vel = x[h:, :]
    o_ref[...] = jnp.concatenate([x[:h, :] + dt * vel, vel], axis=0)


# --------------------------------------------------------------------------
# Kernel 3: geodesic_difference (elementwise x1 - x0).
#   Kept for API completeness; the fused kernel above is the fast path.
# --------------------------------------------------------------------------
def _geodesic_diff_kernel(x1_ref, x0_ref, o_ref):
    o_ref[...] = x1_ref[...] - x0_ref[...]


# --------------------------------------------------------------------------
# Kernel 4: process_noise_cov Q(dt), built from iotas; sv2 folded into the
#   three scalar coefficients. dt is an SMEM scalar. One-vreg output.
# --------------------------------------------------------------------------
def _q_kernel(dt_ref, o_ref, *, sv2):
    d = o_ref.shape[0]
    h = d // 2
    dt = dt_ref[0]
    c_pp = sv2 * dt * dt * dt * (1.0 / 3.0)   # position-position diag
    c_pv = sv2 * dt * dt * 0.5                # cross-block diag
    c_vv = sv2 * dt                           # velocity-velocity diag

    row = jax.lax.broadcasted_iota(jnp.int32, (d, d), 0)
    col = jax.lax.broadcasted_iota(jnp.int32, (d, d), 1)
    diag = row == col
    top = row < h

    q = jnp.where(diag & top, c_pp, jnp.float32(0.0))
    q = jnp.where(diag & ~top, c_vv, q)
    q = jnp.where(((col - row) == h) | ((row - col) == h), c_pv, q)
    o_ref[...] = q.astype(o_ref.dtype)


# --------------------------------------------------------------------------
# Wrapper: concrete DynamicModel (NCV linear model)
# --------------------------------------------------------------------------
class NcvDynamicModelPallas:
    """Concrete DynamicModel (near-constant-velocity) backed by Pallas kernels.

    Public API takes torch-style states x of shape [batch, dimension]
    (positions in columns [:h], velocities in columns [h:]).
    """

    def __init__(self, dimension, dimension_pv, num_process_noise_parameters=None,
                 sv2=1.0):
        assert dimension % 2 == 0, "NCV state must be [positions, velocities]"
        self._dimension = dimension
        self._dimension_pv = dimension_pv
        self._num_process_noise_parameters = num_process_noise_parameters
        self._sv2 = float(sv2)   # noise spectral density (deterministic param)

    # ---- properties mirroring the torch module -----------------------------
    @property
    def dimension(self):
        return self._dimension

    @property
    def dimension_pv(self):
        return self._dimension_pv

    @property
    def num_process_noise_parameters(self):
        return self._num_process_noise_parameters

    # ---- internal helpers ----------------------------------------------------
    @staticmethod
    def _dt_arr(dt):
        return jnp.asarray([dt], dtype=jnp.float32)

    # ---- fused forward + geodesic_difference (optimized path) ---------------
    def forward_and_difference(self, x, x0, dt):
        """Returns (x integrated dt into the future, x_new - x0)."""
        xt = x.T          # [D, B]  lane-dense layout plumbing
        x0t = x0.T
        x_new_t, diff_t = pl.pallas_call(
            _fused_forward_diff_kernel,
            in_specs=[
                pl.BlockSpec(memory_space=pltpu.SMEM),
                pl.BlockSpec(memory_space=pltpu.VMEM),
                pl.BlockSpec(memory_space=pltpu.VMEM),
            ],
            out_specs=(
                pl.BlockSpec(memory_space=pltpu.VMEM),
                pl.BlockSpec(memory_space=pltpu.VMEM),
            ),
            out_shape=(
                jax.ShapeDtypeStruct(xt.shape, x.dtype),
                jax.ShapeDtypeStruct(xt.shape, x.dtype),
            ),
        )(self._dt_arr(dt), xt, x0t)
        return x_new_t.T, diff_t.T

    # ---- forward -------------------------------------------------------------
    def forward(self, x, dt, do_normalization=True):
        # do_normalization is a no-op for the NCV model (Euclidean state space).
        xt = x.T
        x_new_t = pl.pallas_call(
            _forward_kernel,
            in_specs=[
                pl.BlockSpec(memory_space=pltpu.SMEM),
                pl.BlockSpec(memory_space=pltpu.VMEM),
            ],
            out_specs=pl.BlockSpec(memory_space=pltpu.VMEM),
            out_shape=jax.ShapeDtypeStruct(xt.shape, x.dtype),
        )(self._dt_arr(dt), xt)
        return x_new_t.T

    __call__ = forward

    # ---- geodesic_difference (the one concrete op on the base class) --------
    def geodesic_difference(self, x1, x0):
        return pl.pallas_call(
            _geodesic_diff_kernel,
            in_specs=[
                pl.BlockSpec(memory_space=pltpu.VMEM),
                pl.BlockSpec(memory_space=pltpu.VMEM),
            ],
            out_specs=pl.BlockSpec(memory_space=pltpu.VMEM),
            out_shape=jax.ShapeDtypeStruct(x1.shape, x1.dtype),
        )(x1, x0)

    # ---- mean2pv / cov2pv: NCV native state IS a PV state --------------------
    def mean2pv(self, x):
        return x

    def cov2pv(self, P):
        return P

    # ---- process noise covariance ---------------------------------------------
    def process_noise_cov(self, dt=0.0):
        # Note: Q is emitted in float32 regardless of state dtype (covariances
        # should stay in f32); it is a single-vreg write.
        d = self._dimension
        return pl.pallas_call(
            functools.partial(_q_kernel, sv2=self._sv2),
            in_specs=[pl.BlockSpec(memory_space=pltpu.SMEM)],
            out_specs=pl.BlockSpec(memory_space=pltpu.VMEM),
            out_shape=jax.ShapeDtypeStruct((d, d), jnp.float32),
        )(self._dt_arr(dt))

    def process_noise_dist(self, dt=0.0):
        # TODO(synk): pyro returns dist.MultivariateNormal(0, Q); no Pallas/JAX
        # distribution object here — return (mean, covariance) instead.
        Q = self.process_noise_cov(dt)
        return jnp.zeros((Q.shape[-1],), dtype=Q.dtype), Q


# --------------------------------------------------------------------------
# Demo / self-check
# --------------------------------------------------------------------------
if __name__ == "__main__":
    key = jax.random.PRNGKey(0)
    batch, dim = 128, 32        # 128 tracks, 16 positions + 16 velocities each
    sv2 = 1.5
    dt = 0.5

    k1, k2 = jax.random.split(key)
    x = jax.random.normal(k1, (batch, dim), dtype=jnp.float32)
    x0 = jax.random.normal(k2, (batch, dim), dtype=jnp.float32)

    model = NcvDynamicModelPallas(dimension=dim, dimension_pv=dim, sv2=sv2)

    # Fused fast path (forward + geodesic_difference in one pallas_call).
    x_new, diff = model.forward_and_difference(x, x0, dt)
    # Standalone API methods.
    x_new_alone = model.forward(x, dt)
    diff_alone = model.geodesic_difference(x_new_alone, x0)
    Q = model.process_noise_cov(dt)
    jax.block_until_ready((x_new, diff, x_new_alone, diff_alone, Q))

    # ---- pure-JAX references -------------------------------------------------
    h = dim // 2
    x_new_ref = x.at[:, :h].add(dt * x[:, h:])
    diff_ref = x_new_ref - x0
    eye_h = jnp.eye(h, dtype=jnp.float32)
    Q_ref = jnp.zeros((dim, dim), dtype=jnp.float32)
    Q_ref = Q_ref.at[:h, :h].set((dt ** 3 / 3.0) * eye_h)
    Q_ref = Q_ref.at[:h, h:].set((dt ** 2 / 2.0) * eye_h)
    Q_ref = Q_ref.at[h:, :h].set((dt ** 2 / 2.0) * eye_h)
    Q_ref = Q_ref.at[h:, h:].set(dt * eye_h)
    Q_ref = sv2 * Q_ref

    assert jnp.allclose(x_new, x_new_ref, atol=1e-5), "fused forward mismatch"
    assert jnp.allclose(diff, diff_ref, atol=1e-5), "fused diff mismatch"
    assert jnp.allclose(x_new_alone, x_new_ref, atol=1e-5), "forward mismatch"
    assert jnp.allclose(diff_alone, diff_ref, atol=1e-5), "geodesic_difference mismatch"
    assert jnp.allclose(Q, Q_ref, atol=1e-5), "process_noise_cov mismatch"

    print("KERNEL_OK")
</pallas_src>

<mosaic_0001>
module attributes {stable_mosaic.version = 11 : i64} {
  func.func @_fused_forward_diff_kernel(%arg0: memref<1xf32, #tpu.memory_space<smem>>, %arg1: memref<32x128xf32, #tpu.memory_space<vmem>>, %arg2: memref<32x128xf32, #tpu.memory_space<vmem>>, %arg3: memref<32x128xf32, #tpu.memory_space<vmem>>, %arg4: memref<32x128xf32, #tpu.memory_space<vmem>>) attributes {dimension_semantics = [], scalar_prefetch = 0 : i64, scratch_operands = 0 : i64, tpu.core_type = #tpu.core_type<tc>} {
    %c0 = arith.constant 0 : index
    %0 = memref.load %arg0[%c0] : memref<1xf32, #tpu.memory_space<smem>>
    %c0_0 = arith.constant 0 : index
    %c0_1 = arith.constant 0 : index
    %1 = vector.load %arg1[%c0_0, %c0_1] : memref<32x128xf32, #tpu.memory_space<vmem>>, vector<32x128xf32>
    %2 = vector.extract_strided_slice %1 {offsets = [16, 0], sizes = [16, 128], strides = [1, 1]} : vector<32x128xf32> to vector<16x128xf32>
    %3 = vector.extract_strided_slice %1 {offsets = [0, 0], sizes = [16, 128], strides = [1, 1]} : vector<32x128xf32> to vector<16x128xf32>
    %4 = vector.broadcast %0 : f32 to vector<16x128xf32>
    %5 = arith.mulf %4, %2 : vector<16x128xf32>
    %6 = arith.addf %3, %5 : vector<16x128xf32>
    %7 = tpu.concatenate %6, %2 in 0 : vector<16x128xf32>, vector<16x128xf32> -> vector<32x128xf32>
    %c0_2 = arith.constant 0 : index
    %c0_3 = arith.constant 0 : index
    %8 = vector.load %arg3[%c0_2, %c0_3] : memref<32x128xf32, #tpu.memory_space<vmem>>, vector<32x128xf32>
    tpu.vector_store %arg3[%c0_2, %c0_3], %7 {strides = array<i32>} : memref<32x128xf32, #tpu.memory_space<vmem>>, vector<32x128xf32>,
    %c0_4 = arith.constant 0 : index
    %c0_5 = arith.constant 0 : index
    %9 = vector.load %arg2[%c0_4, %c0_5] : memref<32x128xf32, #tpu.memory_space<vmem>>, vector<32x128xf32>
    %10 = arith.subf %7, %9 : vector<32x128xf32>
    %c0_6 = arith.constant 0 : index
    %c0_7 = arith.constant 0 : index
    %11 = vector.load %arg4[%c0_6, %c0_7] : memref<32x128xf32, #tpu.memory_space<vmem>>, vector<32x128xf32>
    tpu.vector_store %arg4[%c0_6, %c0_7], %10 {strides = array<i32>} : memref<32x128xf32, #tpu.memory_space<vmem>>, vector<32x128xf32>,
    return
  }
}

</mosaic_0001>

<llo_original>
// kernel: tpu_custom_call.1
$region0: #{tpu_custom_call.1}
  #allocation0 [shape = 'u32[]', space=smem, size = 0x4, offset = 0x4, fixed_abs, tag = 'smem constant byte address 0x4 - core index']
  #allocation1 [shape = 'u32[72,128]{1,0:T(1,128)}', space=vmem, size = 0x9000, scoped, tag = 'internal scratch']
  #allocation2 [shape = 'f32[1]{0:T(128)S(6)}', space=smem, size = 0x200, scoped, tag = 'scoped memory for tpu_custom_call.1']
  %s0 = inlined_call_operand.<no memory space> [shape: f32[1], index: 0, kind: input, shape index: {}]
  %s1 = inlined_call_operand.hbm [shape: f32[32,128], index: 1, kind: input, shape index: {}]
  %s2 = inlined_call_operand.hbm [shape: f32[32,128], index: 2, kind: input, shape index: {}]
  %s3 = inlined_call_operand.hbm [shape: f32[32,128], index: 3, kind: output, shape index: {0}]
  %s4 = inlined_call_operand.hbm [shape: f32[32,128], index: 4, kind: output, shape index: {1}]
  %5 = xla_tuple %s3, %s4
  %s6 = sld [smem:[#allocation0]]
  $region38: #{tpu_custom_call.1} parent=0
    _
  %s8 = ssub.s32 1, %s6
  %s9 = scalar_select 0, %s8, %s6
  %10 = sst [smem:[#allocation2]] %s0
  $region1: #{tpu_custom_call.1} parent=0
    #allocation3 [shape = 'u8[16384]{0}', space=vmem, size = 0x4000, scoped, tag = 'input window, operand 1, single buffered']
    #allocation4 [shape = 's32[1]{0}', space=sflag, size = 0x4, scoped, tag = 'scoped memory for tpu_custom_call.1']
    #allocation5 [shape = 's32[1]{0}', space=sflag, size = 0x4, scoped, tag = 'scoped memory for tpu_custom_call.1']
    #allocation6 [shape = 'u8[16384]{0}', space=vmem, size = 0x4000, scoped, tag = 'input window, operand 2, single buffered']
    #allocation7 [shape = 's32[1]{0}', space=sflag, size = 0x4, scoped, tag = 'scoped memory for tpu_custom_call.1']
    #allocation8 [shape = 'u8[16384]{0}', space=vmem, size = 0x4000, scoped, tag = 'output window, operand 0, single buffered']
    #allocation9 [shape = 'u8[16384]{0}', space=vmem, size = 0x4000, scoped, tag = 'output window, operand 1, single buffered']
    #allocation10 [shape = 's32[1]{0}', space=sflag, size = 0x4, scoped, tag = 'scoped memory for tpu_custom_call.1']
    %11 = vsyncpa [#allocation4], 0
    %12 = vsyncpa [#allocation7], 0
    %13 = vsyncpa [#allocation5], 0
    %14 = vsyncpa [#allocation10], 0
    // Predicated region
    $region2: #{tpu_custom_call.1} parent=1 // pred_check
      _
    $region3: #{tpu_custom_call.1} parent=1 // pred_check_branch
      %16 = sbr.rel (0) target = $region5
    $region4: #{tpu_custom_call.1} parent=1 // pred_region
      _
    $region5: #{tpu_custom_call.1} parent=1 // pred_fallthru
      _
    // Predicated region
    $region6: #{tpu_custom_call.1} parent=1 // pred_check
      _
    $region7: #{tpu_custom_call.1} parent=1 // pred_check_branch
      %18 = sbr.rel (0) target = $region9
    $region8: #{tpu_custom_call.1} parent=1 // pred_region
      %20 = vsyncadd [#allocation4], 0
      %s21 = sshll.u32 %s1, 4
      %s22 = int_to_ptr.hbm [resolvable:$true] %s21
      %s23 = sshll.u32 [#allocation3], 4
      %s24 = int_to_ptr.vmem [resolvable:$true] %s23
      %29 = dma.hbm_to_vmem [thread:$0]  %s22, 512, %s24, [#allocation4], 128, 128, 8
    $region9: #{tpu_custom_call.1} parent=1 // pred_fallthru
      _
    // Predicated region
    $region10: #{tpu_custom_call.1} parent=1 // pred_check
      _
    $region11: #{tpu_custom_call.1} parent=1 // pred_check_branch
      %31 = sbr.rel (0) target = $region13
    $region12: #{tpu_custom_call.1} parent=1 // pred_region
      %33 = vsyncadd [#allocation7], 0
      %s34 = sshll.u32 %s2, 4
      %s35 = int_to_ptr.hbm [resolvable:$true] %s34
      %s36 = sshll.u32 [#allocation6], 4
      %s37 = int_to_ptr.vmem [resolvable:$true] %s36
      %42 = dma.hbm_to_vmem [thread:$0]  %s35, 512, %s37, [#allocation7], 128, 128, 8
    $region13: #{tpu_custom_call.1} parent=1 // pred_fallthru
      _
    // Predicated region
    $region14: #{tpu_custom_call.1} parent=1 // pred_check
      _
    $region15: #{tpu_custom_call.1} parent=1 // pred_check_branch
      %44 = sbr.rel (0) target = $region17
    $region16: #{tpu_custom_call.1} parent=1 // pred_region
      %46 = dma.done [#allocation4], 512
    $region17: #{tpu_custom_call.1} parent=1 // pred_fallthru
      _
    // Predicated region
    $region18: #{tpu_custom_call.1} parent=1 // pred_check
      _
    $region19: #{tpu_custom_call.1} parent=1 // pred_check_branch
      %48 = sbr.rel (0) target = $region21
    $region20: #{tpu_custom_call.1} parent=1 // pred_region
      %50 = dma.done [#allocation7], 512
    $region21: #{tpu_custom_call.1} parent=1 // pred_fallthru
      _
    %s51 = sld [smem:[#allocation2]]
    %v52 = vld [vmem:[#allocation3] sm:$0xff]
    %v53 = vld [vmem:[#allocation3 + $0x8] sm:$0xff]
    %v54 = vld [vmem:[#allocation3 + $0x10] sm:$0xff]
    %v55 = vld [vmem:[#allocation3 + $0x18] sm:$0xff]
    %v56 = vstv %s51
    %v57 = vmul.f32 %v56, %v54
    %v58 = vmul.f32 %v56, %v55
    %v59 = vadd.f32 %v52, %v57
    %v60 = vadd.f32 %v53, %v58
    %61 = vst [vmem:[#allocation8] sm:$0xff] %v59
    %62 = vst [vmem:[#allocation8 + $0x8] sm:$0xff] %v60
    %63 = vst [vmem:[#allocation8 + $0x10] sm:$0xff] %v54
    %64 = vst [vmem:[#allocation8 + $0x18] sm:$0xff] %v55
    %v65 = vld [vmem:[#allocation6] sm:$0xff]
    %v66 = vld [vmem:[#allocation6 + $0x8] sm:$0xff]
    %v67 = vld [vmem:[#allocation6 + $0x10] sm:$0xff]
    %v68 = vld [vmem:[#allocation6 + $0x18] sm:$0xff]
    %v69 = vsub.f32 %v59, %v65
    %v70 = vsub.f32 %v60, %v66
    %v71 = vsub.f32 %v54, %v67
    %v72 = vsub.f32 %v55, %v68
    %73 = vst [vmem:[#allocation9] sm:$0xff] %v69
    %74 = vst [vmem:[#allocation9 + $0x8] sm:$0xff] %v70
    %75 = vst [vmem:[#allocation9 + $0x10] sm:$0xff] %v71
    %76 = vst [vmem:[#allocation9 + $0x18] sm:$0xff] %v72
    // Predicated region
    $region22: #{tpu_custom_call.1} parent=1 // pred_check
      _
    $region23: #{tpu_custom_call.1} parent=1 // pred_check_branch
      %78 = sbr.rel (0) target = $region25
    $region24: #{tpu_custom_call.1} parent=1 // pred_region
      %80 = vsyncadd [#allocation5], 0
      %s81 = sshll.u32 [#allocation8], 4
      %s82 = int_to_ptr.vmem [resolvable:$true] %s81
      %s83 = sshll.u32 %s3, 4
      %s84 = int_to_ptr.hbm [resolvable:$true] %s83
      %89 = dma.vmem_to_hbm [thread:$0]  %s82, 512, %s84, [#allocation5], 128, 128, 8
    $region25: #{tpu_custom_call.1} parent=1 // pred_fallthru
      _
    // Predicated region
    $region26: #{tpu_custom_call.1} parent=1 // pred_check
      _
    $region27: #{tpu_custom_call.1} parent=1 // pred_check_branch
      %91 = sbr.rel (0) target = $region29
    $region28: #{tpu_custom_call.1} parent=1 // pred_region
      %93 = vsyncadd [#allocation10], 0
      %s94 = sshll.u32 [#allocation9], 4
      %s95 = int_to_ptr.vmem [resolvable:$true] %s94
      %s96 = sshll.u32 %s4, 4
      %s97 = int_to_ptr.hbm [resolvable:$true] %s96
      %102 = dma.vmem_to_hbm [thread:$0]  %s95, 512, %s97, [#allocation10], 128, 128, 8
    $region29: #{tpu_custom_call.1} parent=1 // pred_fallthru
      _
    // Predicated region
    $region30: #{tpu_custom_call.1} parent=1 // pred_check
      _
    $region31: #{tpu_custom_call.1} parent=1 // pred_check_branch
      %104 = sbr.rel (0) target = $region33
    $region32: #{tpu_custom_call.1} parent=1 // pred_region
      %106 = dma.done [#allocation5], 512
    $region33: #{tpu_custom_call.1} parent=1 // pred_fallthru
      _
    // Predicated region
    $region34: #{tpu_custom_call.1} parent=1 // pred_check
      _
    $region35: #{tpu_custom_call.1} parent=1 // pred_check_branch
      %108 = sbr.rel (0) target = $region37
    $region36: #{tpu_custom_call.1} parent=1 // pred_region
      %110 = dma.done [#allocation10], 512
    $region37: #{tpu_custom_call.1} parent=1 // pred_fallthru
      _
    %111 = vsyncpa [#allocation4], 1
    %112 = vsyncpa [#allocation7], 1
    %113 = vsyncpa [#allocation5], 1
    %114 = vsyncpa [#allocation10], 1

</llo_original>
